<compile_context>
chip_gen: v7x
topology: tpu7x:2x2x1
jax: 0.10.0
libtpu: 0.0.40
codegen_flags: <defaults>
</compile_context>

<pallas_src>
import functools

import jax
import jax.numpy as jnp
from jax.experimental import pallas as pl
from jax.experimental.pallas import tpu as pltpu


def _round_up(x: int, m: int) -> int:
    return (x + m - 1) // m * m


def _cdiv(a: int, b: int) -> int:
    return (a + b - 1) // b


def _linear_kernel_out_acc(x_ref, wt_ref, b_ref, o_ref):
    """f32 output path: accumulate directly into o_ref (resident across K)."""
    k = pl.program_id(2)

    @pl.when(k == 0)
    def _init():
        o_ref[...] = jnp.broadcast_to(b_ref[...], o_ref.shape).astype(o_ref.dtype)

    o_ref[...] += jnp.dot(
        x_ref[...], wt_ref[...], preferred_element_type=jnp.float32
    )


def _linear_kernel_scratch_acc(x_ref, wt_ref, b_ref, o_ref, acc_ref):
    """Non-f32 output path: f32 VMEM accumulator, cast once at the last K step."""
    k = pl.program_id(2)

    @pl.when(k == 0)
    def _init():
        acc_ref[...] = jnp.broadcast_to(
            b_ref[...].astype(jnp.float32), acc_ref.shape
        )

    acc_ref[...] += jnp.dot(
        x_ref[...], wt_ref[...], preferred_element_type=jnp.float32
    )

    @pl.when(k == pl.num_programs(2) - 1)
    def _finalize():
        o_ref[...] = acc_ref[...].astype(o_ref.dtype)


def prepare_params(weight, bias, *, tk: int = 512):
    """One-time parameter preparation (call at init, NOT per forward).

    weight: [Out, In] (nn.Linear layout), bias: [Out].
    Returns (w_t, bias2d): w_t is [Inp, Out] with Inp a multiple of the K tile
    (zero-padded only when In > tk), bias2d is [1, Out].
    """
    Out, In = weight.shape
    assert bias.shape == (Out,)
    w_t = weight.T                                    # [In, Out], done once
    if In > tk:
        Inp = _round_up(In, tk)
        w_t = jnp.pad(w_t, ((0, Inp - In), (0, 0)))   # zero K padding, once
    return w_t, bias.reshape(1, Out)


@functools.partial(jax.jit, static_argnames=("tm", "tn", "tk"))
def linear_forward(x, w_t, bias2d, *, tm: int = 512, tn: int = 512, tk: int = 512):
    """y = x @ W.T + b, with W already prepared by `prepare_params`."""
    B, In = x.shape
    Inp, Out = w_t.shape
    assert bias2d.shape == (1, Out)

    # Pad x along K only when the weight was K-padded (In > tk).  Padded K
    # contributions are exactly zero.  M/N are never padded: ragged edge
    # blocks are handled by Pallas masked boundary reads / writes.
    if Inp != In:
        x = jnp.pad(x, ((0, 0), (0, Inp - In)))

    # Tile selection, keeping the (sublane, lane) alignment rules: each block
    # dim must be a multiple of the granule or span the full array dim.
    sub = 32 // jnp.dtype(x.dtype).itemsize           # 8 f32, 16 bf16, 32 int8
    tm_eff = min(tm, _round_up(B, sub))
    tn_eff = min(tn, _round_up(Out, 128))
    tk_eff = min(tk, Inp)                             # == Inp when In <= tk

    # v7x has 2 TensorCores: keep >= 2 tiles on a "parallel" axis when the
    # problem is big enough to split (no-op for tiny shapes / single-TC chips).
    if _cdiv(B, tm_eff) == 1 and _cdiv(Out, tn_eff) == 1 and Out >= 256:
        tn_eff = _round_up(_cdiv(Out, 2), 128)

    grid = (_cdiv(B, tm_eff), _cdiv(Out, tn_eff), Inp // tk_eff)

    out_dtype = x.dtype
    if out_dtype == jnp.float32:
        kernel = _linear_kernel_out_acc
        scratch_shapes = []
    else:
        kernel = _linear_kernel_scratch_acc
        scratch_shapes = [pltpu.VMEM((tm_eff, tn_eff), jnp.float32)]

    itemsize = jnp.dtype(x.dtype).itemsize
    cost = pl.CostEstimate(
        flops=2 * B * In * Out,
        transcendentals=0,
        bytes_accessed=(B * Inp + Inp * Out + Out + B * Out) * itemsize,
    )

    return pl.pallas_call(
        kernel,
        out_shape=jax.ShapeDtypeStruct((B, Out), out_dtype),
        grid=grid,
        in_specs=[
            pl.BlockSpec((tm_eff, tk_eff), lambda i, j, k: (i, k)),   # x
            pl.BlockSpec((tk_eff, tn_eff), lambda i, j, k: (k, j)),   # W^T
            pl.BlockSpec((1, tn_eff), lambda i, j, k: (0, j)),        # bias
        ],
        out_specs=pl.BlockSpec((tm_eff, tn_eff), lambda i, j, k: (i, j)),
        scratch_shapes=scratch_shapes,
        compiler_params=pltpu.CompilerParams(
            dimension_semantics=("parallel", "parallel", "arbitrary"),
        ),
        cost_estimate=cost,
    )(x, w_t, bias2d)


def single_node_net(x, weight, bias, **kw):
    """Convenience wrapper: exact nn.Linear forward (prep + forward).
    In real use, call prepare_params once and linear_forward per step."""
    w_t, b2d = prepare_params(weight, bias, tk=kw.get("tk", 512))
    return linear_forward(x, w_t, b2d, **kw)


if __name__ == "__main__":
    # SingleNodeNet(input_size=32, output_size=16), batch = 8.
    B, In, Out = 8, 32, 16
    key = jax.random.PRNGKey(0)
    kx, kw, kb = jax.random.split(key, 3)

    x = jax.random.normal(kx, (B, In), dtype=jnp.float32)
    bound = 1.0 / (In ** 0.5)
    weight = jax.random.uniform(kw, (Out, In), jnp.float32, -bound, bound)
    bias = jax.random.uniform(kb, (Out,), jnp.float32, -bound, bound)

    # One-time parameter prep (weight transpose / K padding happens here,
    # not on every forward call).
    w_t, b2d = prepare_params(weight, bias)

    out = linear_forward(x, w_t, b2d)
    jax.block_until_ready(out)

    ref = x @ weight.T + bias
    assert out.shape == (B, Out)
    assert jnp.allclose(out, ref, atol=1e-5, rtol=1e-5)

    # Extra check: exercises the K-reduction loop (In > tk) and ragged M/N
    # boundary blocks with masked writes.
    B2, In2, Out2 = 24, 320, 200
    x2 = jax.random.normal(kx, (B2, In2), dtype=jnp.float32)
    w2 = jax.random.normal(kw, (Out2, In2), dtype=jnp.float32) * 0.05
    b2 = jax.random.normal(kb, (Out2,), dtype=jnp.float32)
    w2_t, b2_2d = prepare_params(w2, b2, tk=128)
    out2 = linear_forward(x2, w2_t, b2_2d, tk=128)
    jax.block_until_ready(out2)
    ref2 = x2 @ w2.T + b2
    assert jnp.allclose(out2, ref2, atol=1e-3, rtol=1e-3)

    print("KERNEL_OK")
</pallas_src>

<mosaic_0001>
module attributes {stable_mosaic.version = 11 : i64} {
  func.func @_linear_kernel_out_acc(%arg0: i32, %arg1: i32, %arg2: i32, %arg3: memref<8x32xf32, #tpu.memory_space<vmem>>, %arg4: memref<32x128xf32, #tpu.memory_space<vmem>>, %arg5: memref<1x128xf32, #tpu.memory_space<vmem>>, %arg6: memref<8x128xf32, #tpu.memory_space<vmem>>) attributes {dimension_semantics = [#tpu.dimension_semantics<parallel>, #tpu.dimension_semantics<parallel>, #tpu.dimension_semantics<arbitrary>], iteration_bounds = array<i64: 1, 1, 1>, scalar_prefetch = 0 : i64, scratch_operands = 0 : i64, tpu.core_type = #tpu.core_type<tc>, window_params = [{transform_indices = @transform_0, window_bounds = array<i64: 8, 32>}, {transform_indices = @transform_1, window_bounds = array<i64: 32, 128>}, {transform_indices = @transform_2, window_bounds = array<i64: 1, 128>}, {transform_indices = @transform_3, window_bounds = array<i64: 8, 128>}]} {
    %c0_i32 = arith.constant 0 : i32
    %0 = arith.cmpi eq, %arg2, %c0_i32 : i32
    %1 = arith.extui %0 : i1 to i32
    %c0_i32_0 = arith.constant 0 : i32
    %2 = arith.cmpi ne, %1, %c0_i32_0 : i32
    scf.if %2 {
      %c0_8 = arith.constant 0 : index
      %c0_9 = arith.constant 0 : index
      %9 = vector.load %arg5[%c0_8, %c0_9] : memref<1x128xf32, #tpu.memory_space<vmem>>, vector<1x128xf32>
      %10 = vector.shape_cast %9 : vector<1x128xf32> to vector<1x128xf32>
      %11 = vector.broadcast %10 : vector<1x128xf32> to vector<8x128xf32>
      %c0_10 = arith.constant 0 : index
      %c0_11 = arith.constant 0 : index
      %12 = vector.load %arg6[%c0_10, %c0_11] : memref<8x128xf32, #tpu.memory_space<vmem>>, vector<8x128xf32>
      tpu.vector_store %arg6[%c0_10, %c0_11], %11 {strides = array<i32>} : memref<8x128xf32, #tpu.memory_space<vmem>>, vector<8x128xf32>,
    } else {
    }
    %c0 = arith.constant 0 : index
    %c0_1 = arith.constant 0 : index
    %3 = vector.load %arg6[%c0, %c0_1] : memref<8x128xf32, #tpu.memory_space<vmem>>, vector<8x128xf32>
    %c0_2 = arith.constant 0 : index
    %c0_3 = arith.constant 0 : index
    %4 = vector.load %arg3[%c0_2, %c0_3] : memref<8x32xf32, #tpu.memory_space<vmem>>, vector<8x32xf32>
    %c0_4 = arith.constant 0 : index
    %c0_5 = arith.constant 0 : index
    %5 = vector.load %arg4[%c0_4, %c0_5] : memref<32x128xf32, #tpu.memory_space<vmem>>, vector<32x128xf32>
    %cst = arith.constant dense<0.000000e+00> : vector<8x128xf32>
    %6 = tpu.matmul %4, %5, %cst {dimension_numbers = #tpu.dot_dimension_numbers<[1], [0], [0], [1], [0, 0, 1, 1], [], []>} : vector<8x32xf32>, vector<32x128xf32>, vector<8x128xf32> -> vector<8x128xf32>
    %7 = arith.addf %3, %6 : vector<8x128xf32>
    %c0_6 = arith.constant 0 : index
    %c0_7 = arith.constant 0 : index
    %8 = vector.load %arg6[%c0_6, %c0_7] : memref<8x128xf32, #tpu.memory_space<vmem>>, vector<8x128xf32>
    tpu.vector_store %arg6[%c0_6, %c0_7], %7 {strides = array<i32>} : memref<8x128xf32, #tpu.memory_space<vmem>>, vector<8x128xf32>,
    return
  }
  func.func @transform_0(%arg0: i32, %arg1: i32, %arg2: i32) -> (i32, i32) {
    %c0_i32 = arith.constant 0 : i32
    return %arg0, %arg2 : i32, i32
  }
  func.func @transform_1(%arg0: i32, %arg1: i32, %arg2: i32) -> (i32, i32) {
    %c0_i32 = arith.constant 0 : i32
    return %arg2, %arg1 : i32, i32
  }
  func.func @transform_2(%arg0: i32, %arg1: i32, %arg2: i32) -> (i32, i32) {
    %c0_i32 = arith.constant 0 : i32
    %c0_i32_0 = arith.constant 0 : i32
    return %c0_i32, %arg1 : i32, i32
  }
  func.func @transform_3(%arg0: i32, %arg1: i32, %arg2: i32) -> (i32, i32) {
    %c0_i32 = arith.constant 0 : i32
    return %arg0, %arg1 : i32, i32
  }
}

</mosaic_0001>

<llo_original>
// kernel: linear_forward.1
$region0: #{linear_forward.1}
  #allocation0 [shape = 'u32[]', space=smem, size = 0x4, offset = 0x4, fixed_abs, tag = 'smem constant byte address 0x4 - core index']
  #allocation1 [shape = 'u32[144,128]{1,0:T(1,128)}', space=vmem, size = 0x12000, scoped, tag = 'internal scratch']
  %s0 = inlined_call_operand.vmem [shape: f32[8,32], index: 0, kind: input, shape index: {}]
  %s1 = inlined_call_operand.vmem [shape: f32[32,16], index: 1, kind: input, shape index: {}]
  %s2 = inlined_call_operand.vmem [shape: f32[1,16], index: 2, kind: input, shape index: {}]
  %s3 = inlined_call_operand.hbm [shape: f32[8,16], index: 3, kind: output, shape index: {}]
  %s4 = sld [smem:[#allocation0]]
  $region26: #{linear_forward.1} parent=0
    _
  %s6 = ssub.s32 1, %s4
  %s7 = scalar_select 0, %s6, %s4
  $region1: #{linear_forward.1} parent=0
    #allocation2 [shape = 'u8[4096]{0}', space=vmem, size = 0x1000, scoped, tag = 'output window, operand 0, single buffered']
    #allocation3 [shape = 's32[1]{0}', space=sflag, size = 0x4, scoped, tag = 'scoped memory for linear_forward.1']
    %8 = vsyncpa [#allocation3], 0
    // Predicated region
    $region2: #{linear_forward.1} parent=1 // pred_check
      _
    $region3: #{linear_forward.1} parent=1 // pred_check_branch
      %10 = sbr.rel (0) target = $region5
    $region4: #{linear_forward.1} parent=1 // pred_region
      _
    $region5: #{linear_forward.1} parent=1 // pred_fallthru
      _
    // Predicated region
    $region6: #{linear_forward.1} parent=1 // pred_check
      _
    $region7: #{linear_forward.1} parent=1 // pred_check_branch
      %12 = sbr.rel (0) target = $region9
    $region8: #{linear_forward.1} parent=1 // pred_region
      _
    $region9: #{linear_forward.1} parent=1 // pred_fallthru
      _
    // Predicated region
    $region10: #{linear_forward.1} parent=1 // pred_check
      _
    $region11: #{linear_forward.1} parent=1 // pred_check_branch
      %14 = sbr.rel (0) target = $region13
    $region12: #{linear_forward.1} parent=1 // pred_region
      _
    $region13: #{linear_forward.1} parent=1 // pred_fallthru
      _
    %p15 = scmp.eq.s32.totalorder 0, 0
    // Predicated region
    $region14: #{linear_forward.1} parent=1 // pred_check
      %p16 = pneg %p15
    $region15: #{linear_forward.1} parent=1 // pred_check_branch
      %18 = sbr.rel (%p16) target = $region17
    $region16: #{linear_forward.1} parent=1 // pred_region
      %v19 = vld [vmem:[%s2] sm:$0x1]
      %v21 = vlaneseq
      %v22 = vshrl.u32 %v21, 7
      %v23 = vsub.s32 0, %v22
      %v24 = vrot.slane %v19, %v23
      %26 = vst [vmem:[#allocation2] sm:$0xff] %v24
    $region17: #{linear_forward.1} parent=1 // pred_fallthru
      _
    %v27 = vld [vmem:[#allocation2] sm:$0xff]
    %v28 = vld [vmem:[%s0] sm:$0xff]
    %v29 = vld [vmem:[%s1] sm:$0xff]
    %v30 = vld [vmem:[%s1 + $0x8] sm:$0xff]
    %v31 = vld [vmem:[%s1 + $0x10] sm:$0xff]
    %v32 = vld [vmem:[%s1 + $0x18] sm:$0xff]
    %vm33 = vcmask 261120
    %v35 = vsel %vm33, %v28, 0
    %37 = vmatprep.subr.mxu0 0.0
    %38 = vmatpush1.msra.mxu0 %v29
    %39 = vmatprep.subr.mxu0 0.0
    %40 = vmatpush1.msra.mxu0 %v30
    %41 = vmatprep.subr.mxu0 0.0
    %42 = vmatpush1.msra.mxu0 %v31
    %43 = vmatprep.subr.mxu0 0.0
    %44 = vmatpush1.msra.mxu0 %v32
    %45 = vmatprep.subr.mxu0 0.0
    %46 = vmatpush1.msra.mxu0 0.0
    %47 = vmatprep.subr.mxu0 0.0
    %48 = vmatpush1.msra.mxu0 0.0
    %49 = vmatprep.subr.mxu0 0.0
    %50 = vmatpush1.msra.mxu0 0.0
    %51 = vmatprep.subr.mxu0 0.0
    %52 = vmatpush1.msra.mxu0 0.0
    %53 = vmatprep.subr.mxu0 0.0
    %54 = vmatpush1.msra.mxu0 0.0
    %55 = vmatprep.subr.mxu0 0.0
    %56 = vmatpush1.msra.mxu0 0.0
    %57 = vmatprep.subr.mxu0 0.0
    %58 = vmatpush1.msra.mxu0 0.0
    %59 = vmatprep.subr.mxu0 0.0
    %60 = vmatpush1.msra.mxu0 0.0
    %61 = vmatprep.subr.mxu0 0.0
    %62 = vmatpush1.msra.mxu0 0.0
    %63 = vmatprep.subr.mxu0 0.0
    %64 = vmatpush1.msra.mxu0 0.0
    %65 = vmatprep.subr.mxu0 0.0
    %66 = vmatpush1.msra.mxu0 0.0
    %67 = vmatprep.subr.mxu0 0.0
    %68 = vmatpush1.msra.mxu0 0.0
    %69 = vmatprep.subr.mxu0 0.0
    %70 = vmatpush1.msra.mxu0 0.0
    %71 = vmatprep.subr.mxu0 0.0
    %72 = vmatpush1.msra.mxu0 0.0
    %73 = vmatprep.subr.mxu0 0.0
    %74 = vmatpush1.msra.mxu0 0.0
    %75 = vmatprep.subr.mxu0 0.0
    %76 = vmatpush1.msra.mxu0 0.0
    %77 = vmatprep.subr.mxu0 0.0
    %78 = vmatpush1.msra.mxu0 0.0
    %79 = vmatprep.subr.mxu0 0.0
    %80 = vmatpush1.msra.mxu0 0.0
    %81 = vmatprep.subr.mxu0 0.0
    %82 = vmatpush1.msra.mxu0 0.0
    %83 = vmatprep.subr.mxu0 0.0
    %84 = vmatpush1.msra.mxu0 0.0
    %85 = vmatprep.subr.mxu0 0.0
    %86 = vmatpush1.msra.mxu0 0.0
    %87 = vmatprep.subr.mxu0 0.0
    %88 = vmatpush1.msra.mxu0 0.0
    %89 = vmatprep.subr.mxu0 0.0
    %90 = vmatpush1.msra.mxu0 0.0
    %91 = vmatprep.subr.mxu0 0.0
    %92 = vmatpush1.msra.mxu0 0.0
    %93 = vmatprep.subr.mxu0 0.0
    %94 = vmatpush1.msra.mxu0 0.0
    %95 = vmatprep.subr.mxu0 0.0
    %96 = vmatpush1.msra.mxu0 0.0
    %97 = vmatprep.subr.mxu0 0.0
    %98 = vmatpush1.msra.mxu0 0.0
    %99 = vmatprep.subr.mxu0 0.0
    %100 = vmatpush1.msra.mxu0 0.0
    %101 = vmatprep.mubr.f32.mxu0 0.0
    %102 = vmatmul.mubr.f32.gmra.mrb[0].mxu0 %v35
    %v103 = vpop.f32.mrb[0].mxu0
    %v104 = vadd.f32 0.0, %v103
    %v105 = vpop.f32.mrb[0].mxu0
    %106 = vdwg.mxu0
    %v107 = vadd.f32 %v27, %v104
    %108 = vst [vmem:[#allocation2] sm:$0xff] %v107
    // Predicated region
    $region18: #{linear_forward.1} parent=1 // pred_check
      _
    $region19: #{linear_forward.1} parent=1 // pred_check_branch
      %110 = sbr.rel (0) target = $region21
    $region20: #{linear_forward.1} parent=1 // pred_region
      %s112 = ssub.s32 128, 128
      %113 = vsyncadd [#allocation3], %s112
      %s115 = sshll.u32 [#allocation2], 4
      %s116 = int_to_ptr.vmem [resolvable:$true] %s115
      %118 = dma.vmem_to_hbm [thread:$0]  %s116, 128, %s3, [#allocation3]
    $region21: #{linear_forward.1} parent=1 // pred_fallthru
      _
    // Predicated region
    $region22: #{linear_forward.1} parent=1 // pred_check
      _
    $region23: #{linear_forward.1} parent=1 // pred_check_branch
      %120 = sbr.rel (0) target = $region25
    $region24: #{linear_forward.1} parent=1 // pred_region
      %121 = dma.done [#allocation3], 128
    $region25: #{linear_forward.1} parent=1 // pred_fallthru
      _
    %122 = vsyncpa [#allocation3], 1

</llo_original>
